<compile_context>
chip_gen: v5e
topology: v5e:2x2
jax: 0.10.0
libtpu: 0.0.40
codegen_flags: <defaults>
</compile_context>

<pallas_src>
import jax
import jax.numpy as jnp
from jax.experimental import pallas as pl
from jax.experimental.pallas import tpu as pltpu

# ---------------- problem sizes (small, consistent with the module) ----------------
B = 2          # batch
N = 8          # instances per MIL bag
FEAT_DIM = 32  # feat_dim (report / instance feature dim)
HIDDEN = 32    # mil_params['hidden_feat'] == target_dim
NC = 4         # num_classes
EPS = 1e-5     # nn.LayerNorm default eps

OUT_LANES = 128   # lane-padded output slab (unmasked stores)
TB_MAX = 512      # max batch tile: 512-row images tile is 0.5 MiB -> far below VMEM limits

_ND = N * FEAT_DIM   # 256: lane-dense image row width
_MIL_OFF = 128       # wbig  lanes 128:128+HIDDEN -> row-tiled w_mil   (128-lane aligned)
_E_OFF = 128         # wsmall lanes 128:128+_ND   -> attention lane-expansion matrix


def _layernorm(x, gamma, beta):
    mu = jnp.mean(x, axis=-1, keepdims=True)
    var = jnp.mean((x - mu) ** 2, axis=-1, keepdims=True)
    return (x - mu) * jax.lax.rsqrt(var + EPS) * gamma + beta


def mm_classifier_kernel(images_ref, reports_ref, wbig_ref, wsmall_ref, rv_ref, out_ref):
    imgs = images_ref[...].astype(jnp.float32)        # (TB, N*D) lane-dense
    reports = reports_ref[...].astype(jnp.float32)    # (TB, D)

    # packed row-vectors (each a sublane of one (8,128) tile)
    b_mil = rv_ref[0:1, 0:HIDDEN]
    g_v = rv_ref[1:2, 0:HIDDEN]
    be_v = rv_ref[2:3, 0:HIDDEN]
    g_r = rv_ref[3:4, 0:FEAT_DIM]
    be_r = rv_ref[4:5, 0:FEAT_DIM]
    b_fused = rv_ref[5:6, :]                           # (1, 128)

    # ---- image_mil stand-in: attention-MIL global feature ---------------------
    # TODO(synk): the real image_mil class is loaded dynamically via get_obj_from_str and
    # is not specified; a deterministic attention-MIL pooling (score -> softmax over
    # instances -> weighted sum -> Linear D->H) stands in for the global feature.
    # Scores on the MXU via the block-diagonal w_att (the per-bag scalar score bias
    # cancels under softmax and is omitted).
    w_att_bd = wbig_ref[:, 0:N]                                           # (N*D, N)
    scores = jnp.dot(imgs, w_att_bd, preferred_element_type=jnp.float32)  # (TB, N)
    scores = scores - jnp.max(scores, axis=-1, keepdims=True)
    p = jnp.exp(scores)
    att = p * pl.reciprocal(jnp.sum(p, axis=-1, keepdims=True), approx=True)  # (TB, N)

    # Expand att over each instance's FEAT_DIM lanes (tiny MXU pass), then the weighted
    # instance sum and the MIL projection D->H fuse into ONE matmul with row-tiled w_mil.
    e_mat = wsmall_ref[0:N, _E_OFF:_E_OFF + _ND]                          # (N, N*D) 0/1
    att_exp = jnp.dot(att, e_mat, preferred_element_type=jnp.float32)     # (TB, N*D)
    w_mil_t = wbig_ref[:, _MIL_OFF:_MIL_OFF + HIDDEN]                     # (N*D, H)
    fv_raw = jnp.dot(att_exp * imgs, w_mil_t,
                     preferred_element_type=jnp.float32) + b_mil          # (TB, H)

    # ---- Poolers (LayerNorm -> Linear) + all three classifiers, folded host-side ------
    ln_v = _layernorm(fv_raw, g_v, be_v)                                  # (TB, H)
    ln_r = _layernorm(reports, g_r, be_r)                                 # (TB, D)
    x_pool = jnp.concatenate([ln_v, ln_r], axis=-1)                       # (TB, H+D)
    w_fused = wsmall_ref[:, 0:OUT_LANES]                                  # (H+D, 128)
    out_ref[...] = (
        jnp.dot(x_pool, w_fused, preferred_element_type=jnp.float32) + b_fused
    )


def pack_params(p):
    """Host-side packing of the natural parameter dict into 3 lane-aligned operands."""
    f32 = jnp.float32
    d, h, n = FEAT_DIM, HIDDEN, N

    # guard the layout assumptions (silent-wrong-result risk flagged in review)
    assert p["w_att"].shape == (1, d) and p["w_mil"].shape == (d, h)
    assert p["w_pv"].shape == (h, h) and p["w_pr"].shape == (d, h)
    assert all(p[k].shape == (h, NC) for k in ("w_cv", "w_cr", "w_cf"))
    assert 3 * NC <= OUT_LANES and (n * d) % 128 == 0 and n <= 8

    # ---- fold Pooler denses (block-diag) + classifiers into one weight/bias -----------
    w_cls = jnp.zeros((2 * h, OUT_LANES), f32)
    w_cls = w_cls.at[0:h, 0:NC].set(p["w_cv"])                 # feat_vision -> logits_vision
    w_cls = w_cls.at[h:2 * h, NC:2 * NC].set(p["w_cr"])        # feat_report -> logits_report
    w_cls = w_cls.at[0:h, 2 * NC:3 * NC].set(p["w_cf"])        # feat_vision -> logits_final
    w_cls = w_cls.at[h:2 * h, 2 * NC:3 * NC].set(p["w_cf"])    # feat_report -> logits_final

    w_pool = jnp.zeros((h + d, 2 * h), f32)
    w_pool = w_pool.at[0:h, 0:h].set(p["w_pv"])
    w_pool = w_pool.at[h:h + d, h:2 * h].set(p["w_pr"])

    w_fused = w_pool @ w_cls                                    # (h+d, 128)
    b_pool = jnp.concatenate([p["b_pv"], p["b_pr"]], axis=1)    # (1, 2h)
    b_fused = b_pool @ w_cls                                    # (1, 128)
    b_fused = b_fused.at[0, 0:NC].add(p["b_cv"][0])
    b_fused = b_fused.at[0, NC:2 * NC].add(p["b_cr"][0])
    b_fused = b_fused.at[0, 2 * NC:3 * NC].add(p["b_cf"][0])

    # ---- wbig (N*D, 256): lanes 0:N = block-diag w_att, lanes 128:128+H = tiled w_mil --
    wbig = jnp.zeros((n * d, 2 * 128), f32)
    for i in range(n):
        wbig = wbig.at[i * d:(i + 1) * d, i].set(p["w_att"][0])
        wbig = wbig.at[i * d:(i + 1) * d, _MIL_OFF:_MIL_OFF + h].set(p["w_mil"])

    # ---- wsmall (H+D, 128+N*D): lanes 0:128 = W_fused, lanes 128: = expansion matrix ---
    wsmall = jnp.zeros((h + d, _E_OFF + n * d), f32)
    wsmall = wsmall.at[:, 0:OUT_LANES].set(w_fused)
    for i in range(n):
        wsmall = wsmall.at[i, _E_OFF + i * d:_E_OFF + (i + 1) * d].set(1.0)

    # ---- packed row-vectors (one (8,128) tile) -----------------------------------------
    rv = jnp.zeros((8, OUT_LANES), f32)
    rv = rv.at[0, 0:h].set(p["b_mil"][0])
    rv = rv.at[1, 0:h].set(p["g_v"][0])
    rv = rv.at[2, 0:h].set(p["be_v"][0])
    rv = rv.at[3, 0:d].set(p["g_r"][0])
    rv = rv.at[4, 0:d].set(p["be_r"][0])
    rv = rv.at[5, :].set(b_fused[0])
    return wbig, wsmall, rv


def _round_up(x, m):
    return ((x + m - 1) // m) * m


def _choose_batch_tile(b, tb_max=TB_MAX):
    """Large sublane-aligned tile; >=2 grid steps when possible (v7x megacore)."""
    full = _round_up(b, 8)
    if full <= 8:
        return 8
    half = _round_up((full + 1) // 2, 8)
    return max(8, min(tb_max, half))


def mm_classifier_forward(images, reports, params, *, tb_max=TB_MAX):
    """Whole MMClassifier forward as a single fused Pallas call over a 1-D batch grid."""
    b, n, d = images.shape
    assert (n, d) == (N, FEAT_DIM) and reports.shape == (b, FEAT_DIM)

    # lane-dense image rows: free metadata reshape (contiguous), 4x better vreg/VMEM use
    images_flat = images.reshape(b, n * d)
    wbig, wsmall, rowvecs = pack_params(params)

    tb = _choose_batch_tile(b, tb_max)
    grid = (pl.cdiv(b, tb),)   # no jnp.pad: tail-block garbage rows are masked on store

    out = pl.pallas_call(
        mm_classifier_kernel,
        out_shape=jax.ShapeDtypeStruct((b, OUT_LANES), jnp.float32),
        grid=grid,
        in_specs=[
            pl.BlockSpec((tb, n * d), lambda i: (i, 0)),        # images (bf16 or f32 ok)
            pl.BlockSpec((tb, d), lambda i: (i, 0)),            # reports
            pl.BlockSpec(wbig.shape, lambda i: (0, 0)),         # resident weight slab A
            pl.BlockSpec(wsmall.shape, lambda i: (0, 0)),       # resident weight slab B
            pl.BlockSpec((8, OUT_LANES), lambda i: (0, 0)),     # packed row vectors
        ],
        out_specs=pl.BlockSpec((tb, OUT_LANES), lambda i: (i, 0)),
        compiler_params=pltpu.CompilerParams(dimension_semantics=("parallel",)),
    )(images_flat, reports, wbig, wsmall, rowvecs)

    logits_v = out[:, 0:NC]
    logits_r = out[:, NC:2 * NC]
    logits = out[:, 2 * NC:3 * NC]
    return logits, logits_v, logits_r


def init_params(key):
    ks = jax.random.split(key, 12)
    s = 0.02

    def nrm(k, shape):
        return jax.random.normal(k, shape, jnp.float32) * s

    return {
        # image_mil stand-in (attention-MIL). The per-bag scalar score bias is omitted:
        # a constant shift of all scores cancels exactly under softmax.
        "w_att": nrm(ks[0], (1, FEAT_DIM)),
        "w_mil": nrm(ks[1], (FEAT_DIM, HIDDEN)),
        "b_mil": jnp.zeros((1, HIDDEN), jnp.float32),
        # fc_vision Pooler(HIDDEN, HIDDEN)
        "g_v": jnp.ones((1, HIDDEN), jnp.float32),
        "be_v": jnp.zeros((1, HIDDEN), jnp.float32),
        "w_pv": nrm(ks[2], (HIDDEN, HIDDEN)),
        "b_pv": nrm(ks[3], (1, HIDDEN)),
        # fc_report Pooler(FEAT_DIM, HIDDEN)
        "g_r": jnp.ones((1, FEAT_DIM), jnp.float32),
        "be_r": jnp.zeros((1, FEAT_DIM), jnp.float32),
        "w_pr": nrm(ks[4], (FEAT_DIM, HIDDEN)),
        "b_pr": nrm(ks[5], (1, HIDDEN)),
        # classifiers
        "w_cv": nrm(ks[6], (HIDDEN, NC)),
        "b_cv": nrm(ks[7], (1, NC)),
        "w_cr": nrm(ks[8], (HIDDEN, NC)),
        "b_cr": nrm(ks[9], (1, NC)),
        "w_cf": nrm(ks[10], (HIDDEN, NC)),
        "b_cf": nrm(ks[11], (1, NC)),
    }


def reference_forward(images, reports, p):
    """Pure-JAX reference mirroring the PyTorch forward (both modalities present)."""
    att = jax.nn.softmax(jnp.einsum("bnd,d->bn", images, p["w_att"][0]), axis=-1)
    pooled = jnp.einsum("bn,bnd->bd", att, images)
    fv_raw = pooled @ p["w_mil"] + p["b_mil"]
    feat_vision = _layernorm(fv_raw, p["g_v"], p["be_v"]) @ p["w_pv"] + p["b_pv"]
    feat_report = _layernorm(reports, p["g_r"], p["be_r"]) @ p["w_pr"] + p["b_pr"]
    global_feat = feat_vision + feat_report
    return (
        global_feat @ p["w_cf"] + p["b_cf"],
        feat_vision @ p["w_cv"] + p["b_cv"],
        feat_report @ p["w_cr"] + p["b_cr"],
    )


if __name__ == "__main__":
    key = jax.random.PRNGKey(0)
    k_img, k_rep, k_par = jax.random.split(key, 3)
    images = jax.random.normal(k_img, (B, N, FEAT_DIM), jnp.float32)
    reports = jax.random.normal(k_rep, (B, FEAT_DIM), jnp.float32)
    params = init_params(k_par)

    logits, logits_v, logits_r = mm_classifier_forward(images, reports, params)
    jax.block_until_ready((logits, logits_v, logits_r))

    ref_l, ref_v, ref_r = reference_forward(images, reports, params)
    assert jnp.allclose(logits, ref_l, rtol=1e-3, atol=2e-4)
    assert jnp.allclose(logits_v, ref_v, rtol=1e-3, atol=2e-4)
    assert jnp.allclose(logits_r, ref_r, rtol=1e-3, atol=2e-4)

    print("KERNEL_OK")
</pallas_src>

<mosaic_0001>
module attributes {stable_mosaic.version = 11 : i64} {
  func.func @mm_classifier_kernel(%arg0: i32, %arg1: memref<8x256xf32, #tpu.memory_space<vmem>>, %arg2: memref<8x32xf32, #tpu.memory_space<vmem>>, %arg3: memref<256x256xf32, #tpu.memory_space<vmem>>, %arg4: memref<64x384xf32, #tpu.memory_space<vmem>>, %arg5: memref<8x128xf32, #tpu.memory_space<vmem>>, %arg6: memref<8x128xf32, #tpu.memory_space<vmem>>) attributes {dimension_semantics = [#tpu.dimension_semantics<parallel>], iteration_bounds = array<i64: 1>, scalar_prefetch = 0 : i64, scratch_operands = 0 : i64, tpu.core_type = #tpu.core_type<tc>, window_params = [{transform_indices = @transform_0, window_bounds = array<i64: 8, 256>}, {transform_indices = @transform_1, window_bounds = array<i64: 8, 32>}, {pipeline_mode = #tpu.pipeline_mode<synchronous>, transform_indices = @transform_2, window_bounds = array<i64: 256, 256>}, {pipeline_mode = #tpu.pipeline_mode<synchronous>, transform_indices = @transform_3, window_bounds = array<i64: 64, 384>}, {pipeline_mode = #tpu.pipeline_mode<synchronous>, transform_indices = @transform_4, window_bounds = array<i64: 8, 128>}, {transform_indices = @transform_5, window_bounds = array<i64: 8, 128>}]} {
    %c0 = arith.constant 0 : index
    %c0_0 = arith.constant 0 : index
    %0 = vector.load %arg1[%c0, %c0_0] : memref<8x256xf32, #tpu.memory_space<vmem>>, vector<8x256xf32>
    %c0_1 = arith.constant 0 : index
    %c0_2 = arith.constant 0 : index
    %1 = vector.load %arg2[%c0_1, %c0_2] : memref<8x32xf32, #tpu.memory_space<vmem>>, vector<8x32xf32>
    %c0_3 = arith.constant 0 : index
    %c0_4 = arith.constant 0 : index
    %2 = vector.load %arg5[%c0_3, %c0_4] : memref<8x128xf32, #tpu.memory_space<vmem>>, vector<1x32xf32>
    %c1 = arith.constant 1 : index
    %c0_5 = arith.constant 0 : index
    %3 = vector.load %arg5[%c1, %c0_5] : memref<8x128xf32, #tpu.memory_space<vmem>>, vector<1x32xf32>
    %c2 = arith.constant 2 : index
    %c0_6 = arith.constant 0 : index
    %4 = vector.load %arg5[%c2, %c0_6] : memref<8x128xf32, #tpu.memory_space<vmem>>, vector<1x32xf32>
    %c3 = arith.constant 3 : index
    %c0_7 = arith.constant 0 : index
    %5 = vector.load %arg5[%c3, %c0_7] : memref<8x128xf32, #tpu.memory_space<vmem>>, vector<1x32xf32>
    %c4 = arith.constant 4 : index
    %c0_8 = arith.constant 0 : index
    %6 = vector.load %arg5[%c4, %c0_8] : memref<8x128xf32, #tpu.memory_space<vmem>>, vector<1x32xf32>
    %c5 = arith.constant 5 : index
    %c0_9 = arith.constant 0 : index
    %7 = vector.load %arg5[%c5, %c0_9] : memref<8x128xf32, #tpu.memory_space<vmem>>, vector<1x128xf32>
    %c0_10 = arith.constant 0 : index
    %c0_11 = arith.constant 0 : index
    %8 = vector.load %arg3[%c0_10, %c0_11] : memref<256x256xf32, #tpu.memory_space<vmem>>, vector<256x8xf32>
    %cst = arith.constant dense<0.000000e+00> : vector<8x8xf32>
    %9 = tpu.matmul %0, %8, %cst {dimension_numbers = #tpu.dot_dimension_numbers<[1], [0], [0], [1], [0, 0, 1, 1], [], []>} : vector<8x256xf32>, vector<256x8xf32>, vector<8x8xf32> -> vector<8x8xf32>
    %cst_12 = arith.constant dense<0xFF800000> : vector<8xf32>
    %10 = vector.multi_reduction <maximumf>, %9, %cst_12 [1] : vector<8x8xf32> to vector<8xf32>
    %11 = vector.shape_cast %10 : vector<8xf32> to vector<8x1xf32>
    %12 = vector.broadcast %11 : vector<8x1xf32> to vector<8x8xf32>
    %13 = arith.subf %9, %12 : vector<8x8xf32>
    %14 = math.exp %13 : vector<8x8xf32>
    %cst_13 = arith.constant dense<0.000000e+00> : vector<8xf32>
    %15 = vector.multi_reduction <add>, %14, %cst_13 [1] : vector<8x8xf32> to vector<8xf32>
    %16 = vector.shape_cast %15 : vector<8xf32> to vector<8x1xf32>
    %17 = tpu.reciprocal %16 {approx = true} : vector<8x1xf32> -> vector<8x1xf32>
    %18 = vector.broadcast %17 : vector<8x1xf32> to vector<8x8xf32>
    %19 = arith.mulf %14, %18 : vector<8x8xf32>
    %c0_14 = arith.constant 0 : index
    %c128 = arith.constant 128 : index
    %20 = vector.load %arg4[%c0_14, %c128] : memref<64x384xf32, #tpu.memory_space<vmem>>, vector<8x256xf32>
    %cst_15 = arith.constant dense<0.000000e+00> : vector<8x256xf32>
    %21 = tpu.matmul %19, %20, %cst_15 {dimension_numbers = #tpu.dot_dimension_numbers<[1], [0], [0], [1], [0, 0, 1, 1], [], []>} : vector<8x8xf32>, vector<8x256xf32>, vector<8x256xf32> -> vector<8x256xf32>
    %c0_16 = arith.constant 0 : index
    %c128_17 = arith.constant 128 : index
    %22 = vector.load %arg3[%c0_16, %c128_17] : memref<256x256xf32, #tpu.memory_space<vmem>>, vector<256x32xf32>
    %23 = arith.mulf %21, %0 : vector<8x256xf32>
    %cst_18 = arith.constant dense<0.000000e+00> : vector<8x32xf32>
    %24 = tpu.matmul %23, %22, %cst_18 {dimension_numbers = #tpu.dot_dimension_numbers<[1], [0], [0], [1], [0, 0, 1, 1], [], []>} : vector<8x256xf32>, vector<256x32xf32>, vector<8x32xf32> -> vector<8x32xf32>
    %25 = vector.broadcast %2 : vector<1x32xf32> to vector<8x32xf32>
    %26 = arith.addf %24, %25 : vector<8x32xf32>
    %cst_19 = arith.constant dense<0.000000e+00> : vector<8xf32>
    %27 = vector.multi_reduction <add>, %26, %cst_19 [1] : vector<8x32xf32> to vector<8xf32>
    %28 = vector.shape_cast %27 : vector<8xf32> to vector<8x1xf32>
    %cst_20 = arith.constant 3.200000e+01 : f32
    %29 = vector.broadcast %cst_20 : f32 to vector<8x1xf32>
    %30 = arith.divf %28, %29 : vector<8x1xf32>
    %31 = vector.broadcast %30 : vector<8x1xf32> to vector<8x32xf32>
    %32 = arith.subf %26, %31 : vector<8x32xf32>
    %33 = arith.mulf %32, %32 : vector<8x32xf32>
    %cst_21 = arith.constant dense<0.000000e+00> : vector<8xf32>
    %34 = vector.multi_reduction <add>, %33, %cst_21 [1] : vector<8x32xf32> to vector<8xf32>
    %35 = vector.shape_cast %34 : vector<8xf32> to vector<8x1xf32>
    %cst_22 = arith.constant 3.200000e+01 : f32
    %36 = vector.broadcast %cst_22 : f32 to vector<8x1xf32>
    %37 = arith.divf %35, %36 : vector<8x1xf32>
    %38 = vector.broadcast %30 : vector<8x1xf32> to vector<8x32xf32>
    %39 = arith.subf %26, %38 : vector<8x32xf32>
    %cst_23 = arith.constant 9.99999974E-6 : f32
    %40 = vector.broadcast %cst_23 : f32 to vector<8x1xf32>
    %41 = arith.addf %37, %40 : vector<8x1xf32>
    %42 = math.rsqrt %41 : vector<8x1xf32>
    %43 = vector.broadcast %42 : vector<8x1xf32> to vector<8x32xf32>
    %44 = arith.mulf %39, %43 : vector<8x32xf32>
    %45 = vector.broadcast %3 : vector<1x32xf32> to vector<8x32xf32>
    %46 = arith.mulf %44, %45 : vector<8x32xf32>
    %47 = vector.broadcast %4 : vector<1x32xf32> to vector<8x32xf32>
    %48 = arith.addf %46, %47 : vector<8x32xf32>
    %cst_24 = arith.constant dense<0.000000e+00> : vector<8xf32>
    %49 = vector.multi_reduction <add>, %1, %cst_24 [1] : vector<8x32xf32> to vector<8xf32>
    %50 = vector.shape_cast %49 : vector<8xf32> to vector<8x1xf32>
    %cst_25 = arith.constant 3.200000e+01 : f32
    %51 = vector.broadcast %cst_25 : f32 to vector<8x1xf32>
    %52 = arith.divf %50, %51 : vector<8x1xf32>
    %53 = vector.broadcast %52 : vector<8x1xf32> to vector<8x32xf32>
    %54 = arith.subf %1, %53 : vector<8x32xf32>
    %55 = arith.mulf %54, %54 : vector<8x32xf32>
    %cst_26 = arith.constant dense<0.000000e+00> : vector<8xf32>
    %56 = vector.multi_reduction <add>, %55, %cst_26 [1] : vector<8x32xf32> to vector<8xf32>
    %57 = vector.shape_cast %56 : vector<8xf32> to vector<8x1xf32>
    %cst_27 = arith.constant 3.200000e+01 : f32
    %58 = vector.broadcast %cst_27 : f32 to vector<8x1xf32>
    %59 = arith.divf %57, %58 : vector<8x1xf32>
    %60 = vector.broadcast %52 : vector<8x1xf32> to vector<8x32xf32>
    %61 = arith.subf %1, %60 : vector<8x32xf32>
    %cst_28 = arith.constant 9.99999974E-6 : f32
    %62 = vector.broadcast %cst_28 : f32 to vector<8x1xf32>
    %63 = arith.addf %59, %62 : vector<8x1xf32>
    %64 = math.rsqrt %63 : vector<8x1xf32>
    %65 = vector.broadcast %64 : vector<8x1xf32> to vector<8x32xf32>
    %66 = arith.mulf %61, %65 : vector<8x32xf32>
    %67 = vector.broadcast %5 : vector<1x32xf32> to vector<8x32xf32>
    %68 = arith.mulf %66, %67 : vector<8x32xf32>
    %69 = vector.broadcast %6 : vector<1x32xf32> to vector<8x32xf32>
    %70 = arith.addf %68, %69 : vector<8x32xf32>
    %71 = tpu.concatenate %48, %70 in 1 : vector<8x32xf32>, vector<8x32xf32> -> vector<8x64xf32>
    %c0_29 = arith.constant 0 : index
    %c0_30 = arith.constant 0 : index
    %72 = vector.load %arg4[%c0_29, %c0_30] : memref<64x384xf32, #tpu.memory_space<vmem>>, vector<64x128xf32>
    %cst_31 = arith.constant dense<0.000000e+00> : vector<8x128xf32>
    %73 = tpu.matmul %71, %72, %cst_31 {dimension_numbers = #tpu.dot_dimension_numbers<[1], [0], [0], [1], [0, 0, 1, 1], [], []>} : vector<8x64xf32>, vector<64x128xf32>, vector<8x128xf32> -> vector<8x128xf32>
    %74 = vector.broadcast %7 : vector<1x128xf32> to vector<8x128xf32>
    %75 = arith.addf %73, %74 : vector<8x128xf32>
    %c0_32 = arith.constant 0 : index
    %c0_33 = arith.constant 0 : index
    %76 = vector.load %arg6[%c0_32, %c0_33] : memref<8x128xf32, #tpu.memory_space<vmem>>, vector<8x128xf32>
    tpu.vector_store %arg6[%c0_32, %c0_33], %75 {strides = array<i32>} : memref<8x128xf32, #tpu.memory_space<vmem>>, vector<8x128xf32>,
    return
  }
  func.func @transform_0(%arg0: i32) -> (i32, i32) {
    %c0_i32 = arith.constant 0 : i32
    %c0_i32_0 = arith.constant 0 : i32
    return %arg0, %c0_i32 : i32, i32
  }
  func.func @transform_1(%arg0: i32) -> (i32, i32) {
    %c0_i32 = arith.constant 0 : i32
    %c0_i32_0 = arith.constant 0 : i32
    return %arg0, %c0_i32 : i32, i32
  }
  func.func @transform_2(%arg0: i32) -> (i32, i32) {
    %c0_i32 = arith.constant 0 : i32
    %c0_i32_0 = arith.constant 0 : i32
    %c0_i32_1 = arith.constant 0 : i32
    return %c0_i32, %c0_i32_0 : i32, i32
  }
  func.func @transform_3(%arg0: i32) -> (i32, i32) {
    %c0_i32 = arith.constant 0 : i32
    %c0_i32_0 = arith.constant 0 : i32
    %c0_i32_1 = arith.constant 0 : i32
    return %c0_i32, %c0_i32_0 : i32, i32
  }
  func.func @transform_4(%arg0: i32) -> (i32, i32) {
    %c0_i32 = arith.constant 0 : i32
    %c0_i32_0 = arith.constant 0 : i32
    %c0_i32_1 = arith.constant 0 : i32
    return %c0_i32, %c0_i32_0 : i32, i32
  }
  func.func @transform_5(%arg0: i32) -> (i32, i32) {
    %c0_i32 = arith.constant 0 : i32
    %c0_i32_0 = arith.constant 0 : i32
    return %arg0, %c0_i32 : i32, i32
  }
}

</mosaic_0001>

<llo_original>
// kernel: tpu_custom_call.1
$region0: #{tpu_custom_call.1}
  #allocation0 [shape = 'u32[]', space=smem, size = 0x4, offset = 0x4, fixed_abs, tag = 'smem constant byte address 0x4 - core index']
  #allocation1 [shape = 'u32[72,128]{1,0:T(1,128)}', space=vmem, size = 0x9000, scoped, tag = 'internal scratch']
  %s0 = inlined_call_operand.hbm [shape: f32[2,256], index: 0, kind: input, shape index: {}]
  %s1 = inlined_call_operand.hbm [shape: f32[2,32], index: 1, kind: input, shape index: {}]
  %s2 = inlined_call_operand.hbm [shape: f32[256,256], index: 2, kind: input, shape index: {}]
  %s3 = inlined_call_operand.hbm [shape: f32[64,384], index: 3, kind: input, shape index: {}]
  %s4 = inlined_call_operand.hbm [shape: f32[8,128], index: 4, kind: input, shape index: {}]
  %s5 = inlined_call_operand.hbm [shape: f32[2,128], index: 5, kind: output, shape index: {}]
  %s6 = sld [smem:[#allocation0]]
  $region50: #{tpu_custom_call.1} parent=0
    _
  %s8 = ssub.s32 1, %s6
  %s9 = scalar_select 0, %s8, %s6
  $region1: #{tpu_custom_call.1} parent=0
    #allocation2 [shape = 'u8[8192]{0}', space=vmem, size = 0x2000, scoped, tag = 'input window, operand 0, single buffered']
    #allocation3 [shape = 's32[1]{0}', space=sflag, size = 0x4, scoped, tag = 'scoped memory for tpu_custom_call.1']
    #allocation4 [shape = 's32[1]{0}', space=sflag, size = 0x4, scoped, tag = 'scoped memory for tpu_custom_call.1']
    #allocation5 [shape = 'u8[4096]{0}', space=vmem, size = 0x1000, scoped, tag = 'input window, operand 1, single buffered']
    #allocation6 [shape = 's32[1]{0}', space=sflag, size = 0x4, scoped, tag = 'scoped memory for tpu_custom_call.1']
    #allocation7 [shape = 'u8[262144]{0}', space=vmem, size = 0x40000, scoped, tag = 'input window, operand 2, single buffered']
    #allocation8 [shape = 'u8[98304]{0}', space=vmem, size = 0x18000, scoped, tag = 'input window, operand 3, single buffered']
    #allocation9 [shape = 's32[1]{0}', space=sflag, size = 0x4, scoped, tag = 'scoped memory for tpu_custom_call.1']
    #allocation10 [shape = 'u8[4096]{0}', space=vmem, size = 0x1000, scoped, tag = 'input window, operand 4, single buffered']
    #allocation11 [shape = 'u8[4096]{0}', space=vmem, size = 0x1000, scoped, tag = 'output window, operand 0, single buffered']
    %10 = vsyncpa [#allocation3], 0
    %11 = vsyncpa [#allocation6], 0
    %12 = vsyncpa [#allocation9], 0
    %13 = vsyncpa [#allocation4], 0
    // Predicated region
    $region2: #{tpu_custom_call.1} parent=1 // pred_check
      _
    $region3: #{tpu_custom_call.1} parent=1 // pred_check_branch
      %15 = sbr.rel (0) target = $region5
    $region4: #{tpu_custom_call.1} parent=1 // pred_region
      %17 = vsyncadd [#allocation3], 192
      %s18 = sshll.u32 %s0, 4
      %s19 = int_to_ptr.hbm [resolvable:$true] %s18
      %s20 = sshll.u32 [#allocation2], 4
      %s21 = int_to_ptr.vmem [resolvable:$true] %s20
      %26 = dma.hbm_to_vmem [thread:$0]  %s19, 64, %s21, [#allocation3], 64, 64, 4
    $region5: #{tpu_custom_call.1} parent=1 // pred_fallthru
      _
    // Predicated region
    $region6: #{tpu_custom_call.1} parent=1 // pred_check
      _
    $region7: #{tpu_custom_call.1} parent=1 // pred_check_branch
      %28 = sbr.rel (0) target = $region9
    $region8: #{tpu_custom_call.1} parent=1 // pred_region
      %30 = vsyncadd [#allocation6], 96
      %s31 = sshll.u32 %s1, 4
      %s32 = int_to_ptr.hbm [resolvable:$true] %s31
      %s33 = sshll.u32 [#allocation5], 4
      %s34 = int_to_ptr.vmem [resolvable:$true] %s33
      %39 = dma.hbm_to_vmem [thread:$0]  %s32, 32, %s34, [#allocation6], 32, 32, 2
    $region9: #{tpu_custom_call.1} parent=1 // pred_fallthru
      _
    // Predicated region
    $region10: #{tpu_custom_call.1} parent=1 // pred_check
      _
    $region11: #{tpu_custom_call.1} parent=1 // pred_check_branch
      %41 = sbr.rel (0) target = $region13
    $region12: #{tpu_custom_call.1} parent=1 // pred_region
      %43 = vsyncadd [#allocation6], 0
      %s44 = sshll.u32 %s2, 4
      %s45 = int_to_ptr.hbm [resolvable:$true] %s44
      %s46 = sshll.u32 [#allocation7], 4
      %s47 = int_to_ptr.vmem [resolvable:$true] %s46
      %52 = dma.hbm_to_vmem [thread:$0]  %s45, 8192, %s47, [#allocation6], 256, 256, 16
    $region13: #{tpu_custom_call.1} parent=1 // pred_fallthru
      _
    // Predicated region
    $region14: #{tpu_custom_call.1} parent=1 // pred_check
      _
    $region15: #{tpu_custom_call.1} parent=1 // pred_check_branch
      %54 = sbr.rel (0) target = $region17
    $region16: #{tpu_custom_call.1} parent=1 // pred_region
      %56 = vsyncadd [#allocation9], 0
      %s57 = sshll.u32 %s3, 4
      %s58 = int_to_ptr.hbm [resolvable:$true] %s57
      %s59 = sshll.u32 [#allocation8], 4
      %s60 = int_to_ptr.vmem [resolvable:$true] %s59
      %65 = dma.hbm_to_vmem [thread:$0]  %s58, 3072, %s60, [#allocation9], 384, 384, 24
    $region17: #{tpu_custom_call.1} parent=1 // pred_fallthru
      _
    // Predicated region
    $region18: #{tpu_custom_call.1} parent=1 // pred_check
      _
    $region19: #{tpu_custom_call.1} parent=1 // pred_check_branch
      %67 = sbr.rel (0) target = $region21
    $region20: #{tpu_custom_call.1} parent=1 // pred_region
      %69 = vsyncadd [#allocation9], 0
      %s71 = sshll.u32 %s4, 4
      %s72 = int_to_ptr.hbm [resolvable:$true] %s71
      %s73 = sshll.u32 [#allocation10], 4
      %s74 = int_to_ptr.vmem [resolvable:$true] %s73
      %76 = dma.hbm_to_vmem [thread:$0]  %s72, 128, %s74, [#allocation9]
    $region21: #{tpu_custom_call.1} parent=1 // pred_fallthru
      _
    // Predicated region
    $region22: #{tpu_custom_call.1} parent=1 // pred_check
      _
    $region23: #{tpu_custom_call.1} parent=1 // pred_check_branch
      %78 = sbr.rel (0) target = $region25
    $region24: #{tpu_custom_call.1} parent=1 // pred_region
      %80 = dma.done [#allocation3], 256
    $region25: #{tpu_custom_call.1} parent=1 // pred_fallthru
      _
    // Predicated region
    $region26: #{tpu_custom_call.1} parent=1 // pred_check
      _
    $region27: #{tpu_custom_call.1} parent=1 // pred_check_branch
      %82 = sbr.rel (0) target = $region29
    $region28: #{tpu_custom_call.1} parent=1 // pred_region
      %84 = dma.done [#allocation6], 128
    $region29: #{tpu_custom_call.1} parent=1 // pred_fallthru
      _
    // Predicated region
    $region30: #{tpu_custom_call.1} parent=1 // pred_check
      _
    $region31: #{tpu_custom_call.1} parent=1 // pred_check_branch
      %86 = sbr.rel (0) target = $region33
    $region32: #{tpu_custom_call.1} parent=1 // pred_region
      %88 = dma.done [#allocation6], 8192
    $region33: #{tpu_custom_call.1} parent=1 // pred_fallthru
      _
    // Predicated region
    $region34: #{tpu_custom_call.1} parent=1 // pred_check
      _
    $region35: #{tpu_custom_call.1} parent=1 // pred_check_branch
      %90 = sbr.rel (0) target = $region37
    $region36: #{tpu_custom_call.1} parent=1 // pred_region
      %92 = dma.done [#allocation9], 3072
    $region37: #{tpu_custom_call.1} parent=1 // pred_fallthru
      _
    // Predicated region
    $region38: #{tpu_custom_call.1} parent=1 // pred_check
      _
    $region39: #{tpu_custom_call.1} parent=1 // pred_check_branch
      %94 = sbr.rel (0) target = $region41
    $region40: #{tpu_custom_call.1} parent=1 // pred_region
      %96 = dma.done [#allocation9], 128
    $region41: #{tpu_custom_call.1} parent=1 // pred_fallthru
      _
    %v97 = vld [vmem:[#allocation2] sm:$0xf]
    %v98 = vld [vmem:[#allocation2 + $0x4] sm:$0xf]
    %v99 = vld [vmem:[#allocation2 + $0x8] sm:$0xf]
    %v100 = vld [vmem:[#allocation2 + $0xc] sm:$0xf]
    %v101 = vld [vmem:[#allocation5] sm:$0xff]
    %v102 = vld [vmem:[#allocation10] sm:$0x1]
    %v103 = vld [vmem:[#allocation10 + $0x1] sm:$0x1]
    %v104 = vld [vmem:[#allocation10 + $0x2] sm:$0x1]
    %v105 = vld [vmem:[#allocation10 + $0x3] sm:$0x1]
    %v106 = vld [vmem:[#allocation10 + $0x4] sm:$0x1]
    %v107 = vld [vmem:[#allocation10 + $0x5] sm:$0x1]
    %v108 = vld [vmem:[#allocation7] sm:$0xff]
    %v109 = vld [vmem:[#allocation7 + $0x10] sm:$0xff]
    %v110 = vld [vmem:[#allocation7 + $0x20] sm:$0xff]
    %v111 = vld [vmem:[#allocation7 + $0x30] sm:$0xff]
    %v112 = vld [vmem:[#allocation7 + $0x40] sm:$0xff]
    %v113 = vld [vmem:[#allocation7 + $0x50] sm:$0xff]
    %v114 = vld [vmem:[#allocation7 + $0x60] sm:$0xff]
    %v115 = vld [vmem:[#allocation7 + $0x70] sm:$0xff]
    %v116 = vld [vmem:[#allocation7 + $0x80] sm:$0xff]
    %v117 = vld [vmem:[#allocation7 + $0x90] sm:$0xff]
    %v118 = vld [vmem:[#allocation7 + $0xa0] sm:$0xff]
    %v119 = vld [vmem:[#allocation7 + $0xb0] sm:$0xff]
    %v120 = vld [vmem:[#allocation7 + $0xc0] sm:$0xff]
    %v121 = vld [vmem:[#allocation7 + $0xd0] sm:$0xff]
    %v122 = vld [vmem:[#allocation7 + $0xe0] sm:$0xff]
    %v123 = vld [vmem:[#allocation7 + $0xf0] sm:$0xff]
    %v124 = vld [vmem:[#allocation7 + $0x100] sm:$0xff]
    %v125 = vld [vmem:[#allocation7 + $0x110] sm:$0xff]
    %v126 = vld [vmem:[#allocation7 + $0x120] sm:$0xff]
    %v127 = vld [vmem:[#allocation7 + $0x130] sm:$0xff]
    %v128 = vld [vmem:[#allocation7 + $0x140] sm:$0xff]
    %v129 = vld [vmem:[#allocation7 + $0x150] sm:$0xff]
    %v130 = vld [vmem:[#allocation7 + $0x160] sm:$0xff]
    %v131 = vld [vmem:[#allocation7 + $0x170] sm:$0xff]
    %v132 = vld [vmem:[#allocation7 + $0x180] sm:$0xff]
    %v133 = vld [vmem:[#allocation7 + $0x190] sm:$0xff]
    %v134 = vld [vmem:[#allocation7 + $0x1a0] sm:$0xff]
    %v135 = vld [vmem:[#allocation7 + $0x1b0] sm:$0xff]
    %v136 = vld [vmem:[#allocation7 + $0x1c0] sm:$0xff]
    %v137 = vld [vmem:[#allocation7 + $0x1d0] sm:$0xff]
    %v138 = vld [vmem:[#allocation7 + $0x1e0] sm:$0xff]
    %v139 = vld [vmem:[#allocation7 + $0x1f0] sm:$0xff]
    %144 = vst [vmem:[#allocation1] ss:$4 sm:$0xff] %v97
    %s145 = scalar_lea.vmem [#allocation1], 1
    %146 = vst [vmem:[%s145] ss:$4 sm:$0xff] %v98
    %s147 = scalar_lea.vmem [#allocation1], 2
    %148 = vst [vmem:[%s147] ss:$4 sm:$0xff] %v99
    %s149 = scalar_lea.vmem [#allocation1], 3
    %150 = vst [vmem:[%s149] ss:$4 sm:$0xff] %v100
    %v151 = vld.sshfl [vmem:[#allocation1] sm:$0xff pattern:$0x73625140]
    %v152 = vld.sshfl [vmem:[#allocation1 + $0x8] sm:$0xff pattern:$0x73625140]
    %155 = vmatpush.msra.mxu0 %v123
    %156 = vmatpush.msra.mxu0 %v122
    %157 = vmatpush.msra.mxu0 %v121
    %158 = vmatpush.msra.mxu0 %v120
    %159 = vmatpush.msra.mxu0 %v119
    %160 = vmatpush.msra.mxu0 %v118
    %161 = vmatpush.msra.mxu0 %v117
    %162 = vmatpush.msra.mxu0 %v116
    %163 = vmatpush.msra.mxu0 %v115
    %164 = vmatpush.msra.mxu0 %v114
    %165 = vmatpush.msra.mxu0 %v113
    %166 = vmatpush.msra.mxu0 %v112
    %167 = vmatpush.msra.mxu0 %v111
    %168 = vmatpush.msra.mxu0 %v110
    %169 = vmatpush.msra.mxu0 %v109
    %170 = vmatpush.msra.mxu0 %v108
    %171 = vmatmul.f32.gmra.mxu0 %v151
    %v172 = vpop.f32.mrf.mxu0
    %v173 = vadd.f32 0.0, %v172
    %174 = vdwg.mxu0
    %175 = vmatpush.msra.mxu0 %v139
    %176 = vmatpush.msra.mxu0 %v138
    %177 = vmatpush.msra.mxu0 %v137
    %178 = vmatpush.msra.mxu0 %v136
    %179 = vmatpush.msra.mxu0 %v135
    %180 = vmatpush.msra.mxu0 %v134
    %181 = vmatpush.msra.mxu0 %v133
    %182 = vmatpush.msra.mxu0 %v132
    %183 = vmatpush.msra.mxu0 %v131
    %184 = vmatpush.msra.mxu0 %v130
    %185 = vmatpush.msra.mxu0 %v129
    %186 = vmatpush.msra.mxu0 %v128
    %187 = vmatpush.msra.mxu0 %v127
    %188 = vmatpush.msra.mxu0 %v126
    %189 = vmatpush.msra.mxu0 %v125
    %190 = vmatpush.msra.mxu0 %v124
    %191 = vmatmul.f32.gmra.mxu0 %v152
    %v192 = vpop.f32.mrf.mxu0
    %v193 = vadd.f32 %v173, %v192
    %194 = vdwg.mxu0
    %vm195 = vcmask 64512
    %v196 = vsel %vm195, %v193, -inf
    %197 = vmax.xlane.f32.xlu0 %v196
    %v198 = vpop.xlane.xlu0 %197
    %v199 = vsub.f32 %v193, %v198
    %v200 = vmul.f32 %v199, 1.442695
    %v201 = vpow.pop %v200
    %v202 = vsel %vm195, %v201, 0.0
    %203 = vadd.xlane.f32.xlu0 %v202
    %v204 = vpop.xlane.xlu0 %203
    %v205 = vrcp.pop %v204
    %v206 = vmul.f32 %v201, %v205
    %v207 = vld [vmem:[#allocation8 + $0x8] sm:$0xff]
    %v208 = vld [vmem:[#allocation8 + $0x10] sm:$0xff]
    %v210 = vsel %vm195, %v206, 0
    %212 = vmatpush.msra.mxu0 0.0
    %213 = vmatpush.msra.mxu0 0.0
    %214 = vmatpush.msra.mxu0 0.0
    %215 = vmatpush.msra.mxu0 0.0
    %216 = vmatpush.msra.mxu0 0.0
    %217 = vmatpush.msra.mxu0 0.0
    %218 = vmatpush.msra.mxu0 0.0
    %219 = vmatpush.msra.mxu0 0.0
    %220 = vmatpush.msra.mxu0 0.0
    %221 = vmatpush.msra.mxu0 0.0
    %222 = vmatpush.msra.mxu0 0.0
    %223 = vmatpush.msra.mxu0 0.0
    %224 = vmatpush.msra.mxu0 0.0
    %225 = vmatpush.msra.mxu0 0.0
    %226 = vmatpush.msra.mxu0 0.0
    %227 = vmatpush.msra.mxu0 %v207
    %228 = vmatmul.f32.gmra.mxu0 %v210
    %v229 = vpop.f32.mrf.mxu0
    %v230 = vadd.f32 0.0, %v229
    %231 = vdwg.mxu0
    %232 = vmatpush.msra.mxu0 0.0
    %233 = vmatpush.msra.mxu0 0.0
    %234 = vmatpush.msra.mxu0 0.0
    %235 = vmatpush.msra.mxu0 0.0
    %236 = vmatpush.msra.mxu0 0.0
    %237 = vmatpush.msra.mxu0 0.0
    %238 = vmatpush.msra.mxu0 0.0
    %239 = vmatpush.msra.mxu0 0.0
    %240 = vmatpush.msra.mxu0 0.0
    %241 = vmatpush.msra.mxu0 0.0
    %242 = vmatpush.msra.mxu0 0.0
    %243 = vmatpush.msra.mxu0 0.0
    %244 = vmatpush.msra.mxu0 0.0
    %245 = vmatpush.msra.mxu0 0.0
    %246 = vmatpush.msra.mxu0 0.0
    %247 = vmatpush.msra.mxu0 %v208
    %248 = vmatmul.f32.gmra.mxu0 %v210
    %v249 = vpop.f32.mrf.mxu0
    %v250 = vadd.f32 0.0, %v249
    %251 = vdwg.mxu0
    %v252 = vld [vmem:[#allocation7 + $0x8] sm:$0xff]
    %v253 = vld [vmem:[#allocation7 + $0x18] sm:$0xff]
    %v254 = vld [vmem:[#allocation7 + $0x28] sm:$0xff]
    %v255 = vld [vmem:[#allocation7 + $0x38] sm:$0xff]
    %v256 = vld [vmem:[#allocation7 + $0x48] sm:$0xff]
    %v257 = vld [vmem:[#allocation7 + $0x58] sm:$0xff]
    %v258 = vld [vmem:[#allocation7 + $0x68] sm:$0xff]
    %v259 = vld [vmem:[#allocation7 + $0x78] sm:$0xff]
    %v260 = vld [vmem:[#allocation7 + $0x88] sm:$0xff]
    %v261 = vld [vmem:[#allocation7 + $0x98] sm:$0xff]
    %v262 = vld [vmem:[#allocation7 + $0xa8] sm:$0xff]
    %v263 = vld [vmem:[#allocation7 + $0xb8] sm:$0xff]
    %v264 = vld [vmem:[#allocation7 + $0xc8] sm:$0xff]
    %v265 = vld [vmem:[#allocation7 + $0xd8] sm:$0xff]
    %v266 = vld [vmem:[#allocation7 + $0xe8] sm:$0xff]
    %v267 = vld [vmem:[#allocation7 + $0xf8] sm:$0xff]
    %v268 = vld [vmem:[#allocation7 + $0x108] sm:$0xff]
    %v269 = vld [vmem:[#allocation7 + $0x118] sm:$0xff]
    %v270 = vld [vmem:[#allocation7 + $0x128] sm:$0xff]
    %v271 = vld [vmem:[#allocation7 + $0x138] sm:$0xff]
    %v272 = vld [vmem:[#allocation7 + $0x148] sm:$0xff]
    %v273 = vld [vmem:[#allocation7 + $0x158] sm:$0xff]
    %v274 = vld [vmem:[#allocation7 + $0x168] sm:$0xff]
    %v275 = vld [vmem:[#allocation7 + $0x178] sm:$0xff]
    %v276 = vld [vmem:[#allocation7 + $0x188] sm:$0xff]
    %v277 = vld [vmem:[#allocation7 + $0x198] sm:$0xff]
    %v278 = vld [vmem:[#allocation7 + $0x1a8] sm:$0xff]
    %v279 = vld [vmem:[#allocation7 + $0x1b8] sm:$0xff]
    %v280 = vld [vmem:[#allocation7 + $0x1c8] sm:$0xff]
    %v281 = vld [vmem:[#allocation7 + $0x1d8] sm:$0xff]
    %v282 = vld [vmem:[#allocation7 + $0x1e8] sm:$0xff]
    %v283 = vld [vmem:[#allocation7 + $0x1f8] sm:$0xff]
    %284 = vst [vmem:[#allocation1] ss:$4 sm:$0xff] %v97
    %s285 = scalar_lea.vmem [#allocation1], 1
    %286 = vst [vmem:[%s285] ss:$4 sm:$0xff] %v98
    %s287 = scalar_lea.vmem [#allocation1], 2
    %288 = vst [vmem:[%s287] ss:$4 sm:$0xff] %v99
    %s289 = scalar_lea.vmem [#allocation1], 3
    %290 = vst [vmem:[%s289] ss:$4 sm:$0xff] %v100
    %v291 = vld.sshfl [vmem:[#allocation1] sm:$0xff pattern:$0x73625140]
    %v292 = vld.sshfl [vmem:[#allocation1 + $0x8] sm:$0xff pattern:$0x73625140]
    %v295 = vmul.f32 %v230, %v291
    %v296 = vmul.f32 %v250, %v292
    %v297 = vperm.slane %v102, 0
    %298 = vmatpush.msra.mxu0 %v267
    %299 = vmatpush.msra.mxu0 %v266
    %300 = vmatpush.msra.mxu0 %v265
    %301 = vmatpush.msra.mxu0 %v264
    %302 = vmatpush.msra.mxu0 %v263
    %303 = vmatpush.msra.mxu0 %v262
    %304 = vmatpush.msra.mxu0 %v261
    %305 = vmatpush.msra.mxu0 %v260
    %306 = vmatpush.msra.mxu0 %v259
    %307 = vmatpush.msra.mxu0 %v258
    %308 = vmatpush.msra.mxu0 %v257
    %309 = vmatpush.msra.mxu0 %v256
    %310 = vmatpush.msra.mxu0 %v255
    %311 = vmatpush.msra.mxu0 %v254
    %312 = vmatpush.msra.mxu0 %v253
    %313 = vmatpush.msra.mxu0 %v252
    %314 = vmatmul.f32.gmra.mxu0 %v295
    %v315 = vpop.f32.mrf.mxu0
    %v316 = vadd.f32 %v297, %v315
    %317 = vdwg.mxu0
    %318 = vmatpush.msra.mxu0 %v283
    %319 = vmatpush.msra.mxu0 %v282
    %320 = vmatpush.msra.mxu0 %v281
    %321 = vmatpush.msra.mxu0 %v280
    %322 = vmatpush.msra.mxu0 %v279
    %323 = vmatpush.msra.mxu0 %v278
    %324 = vmatpush.msra.mxu0 %v277
    %325 = vmatpush.msra.mxu0 %v276
    %326 = vmatpush.msra.mxu0 %v275
    %327 = vmatpush.msra.mxu0 %v274
    %328 = vmatpush.msra.mxu0 %v273
    %329 = vmatpush.msra.mxu0 %v272
    %330 = vmatpush.msra.mxu0 %v271
    %331 = vmatpush.msra.mxu0 %v270
    %332 = vmatpush.msra.mxu0 %v269
    %333 = vmatpush.msra.mxu0 %v268
    %334 = vmatmul.f32.gmra.mxu0 %v296
    %v335 = vpop.f32.mrf.mxu0
    %v336 = vadd.f32 %v316, %v335
    %337 = vdwg.mxu0
    %vm338 = vcmask 261120
    %v339 = vsel %vm338, %v336, 0.0
    %340 = vadd.xlane.f32.xlu0 %v339
    %v341 = vpop.xlane.xlu0 %340
    %v342 = vrcp.pop 32.0
    %v343 = vmul.f32 32.0, %v342
    %v344 = vsub.f32 1.0, %v343
    %v345 = vmul.f32 %v342, %v344
    %v346 = vadd.f32 %v342, %v345
    %vm347 = vweird.f32 %v342
    %v348 = vsel %vm347, %v342, %v346
    %v349 = vmul.f32 %v341, %v348
    %v350 = vsub.f32 %v336, %v349
    %v351 = vmul.f32 %v350, %v350
    %v352 = vsel %vm338, %v351, 0.0
    %353 = vadd.xlane.f32.xlu0 %v352
    %v354 = vpop.xlane.xlu0 %353
    %v355 = vmul.f32 %v354, %v348
    %v356 = vadd.f32 %v355, 1e-05
    %v357 = vrsqrt.pop %v356
    %v358 = vmul.f32 %v357, %v356
    %v359 = vmul.f32 %v358, %v357
    %v360 = vmul.f32 0.5, %v359
    %v361 = vsub.f32 1.5, %v360
    %v362 = vmul.f32 %v357, %v361
    %vm363 = vweird.f32 %v356
    %vm364 = vweird.f32 %v357
    %vm365 = vmor %vm363, %vm364
    %v366 = vsel %vm365, %v357, %v362
    %v367 = vmul.f32 %v350, %v366
    %v368 = vperm.slane %v103, 0
    %v369 = vmul.f32 %v367, %v368
    %v370 = vperm.slane %v104, 0
    %v371 = vadd.f32 %v369, %v370
    %v372 = vsel %vm338, %v101, 0.0
    %373 = vadd.xlane.f32.xlu0 %v372
    %v374 = vpop.xlane.xlu0 %373
    %v375 = vmul.f32 %v374, %v348
    %v376 = vsub.f32 %v101, %v375
    %v377 = vmul.f32 %v376, %v376
    %v378 = vsel %vm338, %v377, 0.0
    %379 = vadd.xlane.f32.xlu0 %v378
    %v380 = vpop.xlane.xlu0 %379
    %v381 = vmul.f32 %v380, %v348
    %v382 = vadd.f32 %v381, 1e-05
    %v383 = vrsqrt.pop %v382
    %v384 = vmul.f32 %v383, %v382
    %v385 = vmul.f32 %v384, %v383
    %v386 = vmul.f32 0.5, %v385
    %v387 = vsub.f32 1.5, %v386
    %v388 = vmul.f32 %v383, %v387
    %vm389 = vweird.f32 %v382
    %vm390 = vweird.f32 %v383
    %vm391 = vmor %vm389, %vm390
    %v392 = vsel %vm391, %v383, %v388
    %v393 = vmul.f32 %v376, %v392
    %v394 = vperm.slane %v105, 0
    %v395 = vmul.f32 %v393, %v394
    %v396 = vperm.slane %v106, 0
    %v397 = vadd.f32 %v395, %v396
    %399 = vrot.lane.b32.xlu0 %v397, 32
    %v400 = vpop.permute.xlu0 %399
    %v402 = vsel %vm338, %v371, %v400
    %v403 = vld [vmem:[#allocation8] sm:$0xff]
    %v404 = vld [vmem:[#allocation8 + $0x18] sm:$0xff]
    %v405 = vld [vmem:[#allocation8 + $0x30] sm:$0xff]
    %v406 = vld [vmem:[#allocation8 + $0x48] sm:$0xff]
    %v407 = vld [vmem:[#allocation8 + $0x60] sm:$0xff]
    %v408 = vld [vmem:[#allocation8 + $0x78] sm:$0xff]
    %v409 = vld [vmem:[#allocation8 + $0x90] sm:$0xff]
    %v410 = vld [vmem:[#allocation8 + $0xa8] sm:$0xff]
    %v411 = vperm.slane %v107, 0
    %vm412 = vcmask 523264
    %v414 = vsel %vm412, %v402, 0
    %416 = vmatpush.msra.mxu0 0.0
    %417 = vmatpush.msra.mxu0 0.0
    %418 = vmatpush.msra.mxu0 0.0
    %419 = vmatpush.msra.mxu0 0.0
    %420 = vmatpush.msra.mxu0 0.0
    %421 = vmatpush.msra.mxu0 0.0
    %422 = vmatpush.msra.mxu0 0.0
    %423 = vmatpush.msra.mxu0 0.0
    %424 = vmatpush.msra.mxu0 %v410
    %425 = vmatpush.msra.mxu0 %v409
    %426 = vmatpush.msra.mxu0 %v408
    %427 = vmatpush.msra.mxu0 %v407
    %428 = vmatpush.msra.mxu0 %v406
    %429 = vmatpush.msra.mxu0 %v405
    %430 = vmatpush.msra.mxu0 %v404
    %431 = vmatpush.msra.mxu0 %v403
    %432 = vmatmul.f32.gmra.mxu0 %v414
    %v433 = vpop.f32.mrf.mxu0
    %v434 = vadd.f32 %v411, %v433
    %435 = vdwg.mxu0
    %436 = vst [vmem:[#allocation11] sm:$0xff] %v434
    // Predicated region
    $region42: #{tpu_custom_call.1} parent=1 // pred_check
      _
    $region43: #{tpu_custom_call.1} parent=1 // pred_check_branch
      %438 = sbr.rel (0) target = $region45
    $region44: #{tpu_custom_call.1} parent=1 // pred_region
      %440 = vsyncadd [#allocation4], 96
      %s441 = sshll.u32 [#allocation11], 4
      %s442 = int_to_ptr.vmem [resolvable:$true] %s441
      %s443 = sshll.u32 %s5, 4
      %s444 = int_to_ptr.hbm [resolvable:$true] %s443
      %449 = dma.vmem_to_hbm [thread:$0]  %s442, 32, %s444, [#allocation4], 32, 32, 2
    $region45: #{tpu_custom_call.1} parent=1 // pred_fallthru
      _
    // Predicated region
    $region46: #{tpu_custom_call.1} parent=1 // pred_check
      _
    $region47: #{tpu_custom_call.1} parent=1 // pred_check_branch
      %451 = sbr.rel (0) target = $region49
    $region48: #{tpu_custom_call.1} parent=1 // pred_region
      %453 = dma.done [#allocation4], 128
    $region49: #{tpu_custom_call.1} parent=1 // pred_fallthru
      _
    %454 = vsyncpa [#allocation3], 1
    %455 = vsyncpa [#allocation6], 1
    %456 = vsyncpa [#allocation9], 1
    %457 = vsyncpa [#allocation4], 1

</llo_original>
